<compile_context>
chip_gen: v5e
topology: v5e:2x2
jax: 0.10.0
libtpu: 0.0.40
codegen_flags: <defaults>
</compile_context>

<pallas_src>
import functools
import math

import jax
import jax.numpy as jnp
import numpy as np
from jax.experimental import pallas as pl
from jax.experimental.pallas import tpu as pltpu


def _depthwise_net_kernel(x_ref, w_ref, b_ref, a_ref, lw_ref, lb_ref, o_ref, *,
                          num_levels, kernel_size, dilation_c, block_b, channels,
                          compute_dtype):
    """One grid step processes Bt batch elements laid out as a (Bt*C, T) slab.

    x_ref : (Bt*C, T)            flattened activations (C on sublanes, T on lanes)
    w_ref : (L, K, Bt*C, 1)      depthwise taps, pre-tiled per batch element
    b_ref : (L, Bt*C, 1)         conv bias (pre-tiled, pre-cast)
    a_ref : (L, Bt*C, 1)         PReLU slope (pre-tiled, pre-cast)
    lw_ref: (C, C)               LastBlock Linear weight (compute dtype)
    lb_ref: (C, 1)               LastBlock Linear bias (f32)
    o_ref : (Bt*C, T)
    """
    Bt, C = block_b, channels
    cdt = compute_dtype

    x = x_ref[...].astype(cdt)                 # single upcast (no-op if dtypes match)
    BC, T = x.shape

    # One (1, T) iota row; jnp.where broadcasts it along sublanes -> per-tap
    # compare is T elements, not C*T, and no int32 (C, T) slab lives in VMEM.
    lane = jax.lax.broadcasted_iota(jnp.int32, (1, T), 1)

    wrote_out = False
    for l in range(num_levels):
        d = dilation_c ** l
        bias = b_ref[l]                        # (BC, 1), already compute dtype

        # Causal dilated depthwise conv (== zero-padded conv followed by Chomp1d):
        #   conv[c, t] = b[c] + sum_j w[l, j, c] * x[c, t - d*(k-1-j)]
        conv = None
        for j in range(kernel_size):
            s = d * (kernel_size - 1 - j)
            if s >= T:
                continue                       # tap fully shifted out: dead work
            if s == 0:
                shifted = x
            else:
                # XLU roll + one select; wrap-around region zeroed by the mask.
                shifted = jnp.where(lane >= s, pltpu.roll(x, shift=s, axis=1), 0.0)
            term = w_ref[l, j] * shifted       # (BC, 1) broadcast over lanes
            conv = term + bias if conv is None else conv + term
        if conv is None:                       # only possible if every tap was dead
            conv = jnp.broadcast_to(bias, (BC, T)).astype(cdt)

        z = conv if l == 0 else conv + x       # FirstBlock has no residual

        if l == num_levels - 1 and num_levels > 1:
            # LastBlock: Linear over the channel dim of (conv + x).  Always on the
            # MXU (it is otherwise idle); bf16 operands / f32 accumulate when the
            # compute dtype is bf16 (v6e / v7x), plain f32 matmul otherwise.
            lw = lw_ref[...]
            lb = lb_ref[...]                   # (C, 1) f32, added to f32 accumulator
            for bb in range(Bt):
                z_b = z[bb * C:(bb + 1) * C, :]                      # (C, T)
                y = jnp.dot(lw, z_b, preferred_element_type=jnp.float32) + lb
                o_ref[bb * C:(bb + 1) * C, :] = y.astype(o_ref.dtype)
            wrote_out = True
        else:
            # PReLU as 3 full-tile VALU ops: mul, cmp, select.
            x = jnp.where(z >= 0, z, a_ref[l] * z)

    if not wrote_out:
        o_ref[...] = x.astype(o_ref.dtype)


def depthwise_net(x, conv_w, conv_b, alpha, lin_w, lin_b, *,
                  kernel_size, dilation_c):
    B, C, T = x.shape
    L = conv_w.shape[0]

    # ---- compute dtype: bf16 only where the VPU has bf16 (v6e / v7x) -------------
    try:
        kind = jax.devices()[0].device_kind.lower()
    except Exception:  # pragma: no cover - defensive, e.g. interpret mode
        kind = ""
    old_gen = any(v in kind for v in ("v2", "v3", "v4", "v5"))
    compute_dtype = (jnp.bfloat16
                     if (x.dtype == jnp.bfloat16 and not old_gen)
                     else jnp.float32)
    # NOTE: with bf16 inputs the conv/residual sums stay bf16 (f32 only in the
    # final Linear accumulator); deep nets that need tighter accumulation should
    # force compute_dtype = f32.

    # ---- lane-dense time axis (causality makes right-padding safe) ---------------
    T_pad = max(128, ((T + 127) // 128) * 128)

    # ---- VMEM budget -> batch block Bt -------------------------------------------
    try:
        vmem_cap = int(pltpu.get_tpu_info().vmem_capacity_bytes)
    except Exception:  # pragma: no cover - defensive
        vmem_cap = 64 * 2 ** 20                 # assume the tightest (v7x) budget
    in_bytes = jnp.dtype(x.dtype).itemsize
    c_bytes = jnp.dtype(compute_dtype).itemsize
    # double-buffered in+out blocks (~4x in_bytes) + ~8 live (C, T) compute slabs
    per_elem_live = C * T_pad * (4 * in_bytes + 8 * c_bytes)
    budget = min(vmem_cap // 4, 8 * 2 ** 20)
    Bt = int(max(1, min(B, budget // max(per_elem_live, 1))))
    # keep Bt*C a multiple of 8 so the (Bt*C, T_pad) block satisfies (8, 128) tiling
    m = 8 // math.gcd(C, 8)
    Bt = max(m, (Bt // m) * m)
    B_pad = ((B + Bt - 1) // Bt) * Bt
    BC = Bt * C

    x_in = x
    if T_pad != T or B_pad != B:
        x_in = jnp.pad(x, ((0, B_pad - B), (0, 0), (0, T_pad - T)))
    # Flatten (B_pad, C, T_pad) -> (B_pad*C, T_pad): contiguous, free reshape; the
    # kernel then works on plain 2-D slabs (full sublane packing even for small C).
    x_flat = x_in.reshape(B_pad * C, T_pad)

    # ---- pre-tile / pre-cast params: no per-tap casts or relayouts in the body ----
    w_t = jnp.tile(conv_w, (1, 1, Bt, 1)).astype(compute_dtype)    # (L, K, BC, 1)
    b_t = jnp.tile(conv_b, (1, Bt, 1)).astype(compute_dtype)       # (L, BC, 1)
    a_t = jnp.tile(alpha, (1, Bt, 1)).astype(compute_dtype)        # (L, BC, 1)
    lw_c = lin_w.astype(compute_dtype)                             # bf16 MXU operands on v6e/v7x
    lb_c = lin_b.astype(jnp.float32)                               # added to f32 accumulator

    vmem_limit = int(min(vmem_cap * 3 // 4,
                         max(8 * 2 ** 20, 2 * Bt * per_elem_live + 4 * 2 ** 20)))

    kernel = functools.partial(
        _depthwise_net_kernel, num_levels=L, kernel_size=kernel_size,
        dilation_c=dilation_c, block_b=Bt, channels=C, compute_dtype=compute_dtype)

    out_flat = pl.pallas_call(
        kernel,
        out_shape=jax.ShapeDtypeStruct((B_pad * C, T_pad), x.dtype),
        grid=(B_pad // Bt,),
        in_specs=[
            pl.BlockSpec((BC, T_pad), lambda g: (g, 0)),                 # x slab
            pl.BlockSpec((L, kernel_size, BC, 1), lambda g: (0, 0, 0, 0)),  # conv W
            pl.BlockSpec((L, BC, 1), lambda g: (0, 0, 0)),               # conv b
            pl.BlockSpec((L, BC, 1), lambda g: (0, 0, 0)),               # alpha
            pl.BlockSpec((C, C), lambda g: (0, 0)),                      # lin W
            pl.BlockSpec((C, 1), lambda g: (0, 0)),                      # lin b
        ],
        out_specs=pl.BlockSpec((BC, T_pad), lambda g: (g, 0)),
        compiler_params=pltpu.CompilerParams(
            dimension_semantics=("parallel",),
            vmem_limit_bytes=vmem_limit),
    )(x_flat, w_t, b_t, a_t, lw_c, lb_c)

    out = out_flat.reshape(B_pad, C, T_pad)
    return out[:B, :, :T]


def _ref_forward(x, conv_w, conv_b, alpha, lin_w, lin_b, kernel_size, dilation_c):
    """Pure-JAX reference mirroring the PyTorch forward semantics
    (causal conv = zero-pad both sides + Chomp1d trim)."""
    B, C, T = x.shape
    L = conv_w.shape[0]
    h = x
    for l in range(L):
        d = dilation_c ** l
        pad = (kernel_size - 1) * d
        xp = jnp.pad(h, ((0, 0), (0, 0), (pad, 0)))
        out = jnp.zeros((B, C, T), jnp.float32)
        for j in range(kernel_size):
            out = out + conv_w[l, j][None, :, :] * xp[:, :, j * d: j * d + T]
        out = out + conv_b[l][None, :, :]
        if l == 0:
            h = jnp.where(out >= 0, out, alpha[l][None] * out)
        elif l == L - 1:
            z = out + h
            zt = jnp.transpose(z, (0, 2, 1))              # (B, T, C)
            yt = zt @ lin_w.T + lin_b[:, 0][None, None, :]
            h = jnp.transpose(yt, (0, 2, 1))
        else:
            z = out + h
            h = jnp.where(z >= 0, z, alpha[l][None] * z)
    return h


if __name__ == "__main__":
    B, C, T = 2, 8, 32
    num_levels, kernel_size, dilation_c = 3, 2, 2
    L = num_levels

    key = jax.random.PRNGKey(0)
    ks = jax.random.split(key, 6)
    x = jax.random.normal(ks[0], (B, C, T), jnp.float32)

    # Deterministic synthetic params (PyTorch init: conv weight ~ N(0, 0.1),
    # linear weight ~ N(0, 0.01), PReLU alpha = 0.25 default).
    conv_w = 0.1 * jax.random.normal(ks[1], (L, kernel_size, C, 1), jnp.float32)
    conv_b = 0.1 * jax.random.normal(ks[2], (L, C, 1), jnp.float32)
    alpha = jnp.full((L, C, 1), 0.25, jnp.float32)   # last level's row unused
    lin_w = 0.01 * jax.random.normal(ks[3], (C, C), jnp.float32)
    lin_b = 0.1 * jax.random.normal(ks[4], (C, 1), jnp.float32)

    out = depthwise_net(x, conv_w, conv_b, alpha, lin_w, lin_b,
                        kernel_size=kernel_size, dilation_c=dilation_c)
    out = jax.block_until_ready(out)

    ref = _ref_forward(x, conv_w, conv_b, alpha, lin_w, lin_b,
                       kernel_size, dilation_c)
    np.testing.assert_allclose(np.asarray(out), np.asarray(ref),
                               rtol=1e-5, atol=1e-5)
    print("KERNEL_OK")
</pallas_src>

<mosaic_0001>
module attributes {stable_mosaic.version = 11 : i64} {
  func.func @_depthwise_net_kernel(%arg0: i32, %arg1: memref<16x128xf32, #tpu.memory_space<vmem>>, %arg2: memref<3x2x16x1xf32, #tpu.memory_space<vmem>>, %arg3: memref<3x16x1xf32, #tpu.memory_space<vmem>>, %arg4: memref<3x16x1xf32, #tpu.memory_space<vmem>>, %arg5: memref<8x8xf32, #tpu.memory_space<vmem>>, %arg6: memref<8x1xf32, #tpu.memory_space<vmem>>, %arg7: memref<16x128xf32, #tpu.memory_space<vmem>>) attributes {dimension_semantics = [#tpu.dimension_semantics<parallel>], iteration_bounds = array<i64: 1>, scalar_prefetch = 0 : i64, scratch_operands = 0 : i64, tpu.core_type = #tpu.core_type<tc>, window_params = [{transform_indices = @transform_0, window_bounds = array<i64: 16, 128>}, {pipeline_mode = #tpu.pipeline_mode<synchronous>, transform_indices = @transform_1, window_bounds = array<i64: 3, 2, 16, 1>}, {pipeline_mode = #tpu.pipeline_mode<synchronous>, transform_indices = @transform_2, window_bounds = array<i64: 3, 16, 1>}, {pipeline_mode = #tpu.pipeline_mode<synchronous>, transform_indices = @transform_3, window_bounds = array<i64: 3, 16, 1>}, {pipeline_mode = #tpu.pipeline_mode<synchronous>, transform_indices = @transform_4, window_bounds = array<i64: 8, 8>}, {pipeline_mode = #tpu.pipeline_mode<synchronous>, transform_indices = @transform_5, window_bounds = array<i64: 8, 1>}, {transform_indices = @transform_6, window_bounds = array<i64: 16, 128>}]} {
    %c0 = arith.constant 0 : index
    %c0_0 = arith.constant 0 : index
    %0 = vector.load %arg1[%c0, %c0_0] : memref<16x128xf32, #tpu.memory_space<vmem>>, vector<16x128xf32>
    %1 = tpu.iota {dimensions = array<i32: 1>} : vector<1x128xi32>
    %c0_1 = arith.constant 0 : index
    %c0_2 = arith.constant 0 : index
    %c0_3 = arith.constant 0 : index
    %2 = vector.load %arg3[%c0_1, %c0_2, %c0_3] : memref<3x16x1xf32, #tpu.memory_space<vmem>>, vector<1x16x1xf32>
    %3 = vector.shape_cast %2 : vector<1x16x1xf32> to vector<16x1xf32>
    %c1_i32 = arith.constant 1 : i32
    %4 = vector.broadcast %c1_i32 : i32 to vector<1x128xi32>
    %5 = arith.cmpi sge, %1, %4 : vector<1x128xi32>
    %c1_i32_4 = arith.constant 1 : i32
    %6 = tpu.dynamic_rotate %0 by %c1_i32_4 dim 1 : vector<16x128xf32>, i32 -> vector<16x128xf32>
    %cst = arith.constant 0.000000e+00 : f32
    %7 = vector.shape_cast %5 : vector<1x128xi1> to vector<1x128xi1>
    %8 = vector.broadcast %7 : vector<1x128xi1> to vector<16x128xi1>
    %9 = vector.broadcast %cst : f32 to vector<16x128xf32>
    %10 = arith.select %8, %6, %9 : vector<16x128xi1>, vector<16x128xf32>
    %c0_5 = arith.constant 0 : index
    %c0_6 = arith.constant 0 : index
    %c0_7 = arith.constant 0 : index
    %c0_8 = arith.constant 0 : index
    %11 = vector.load %arg2[%c0_5, %c0_6, %c0_7, %c0_8] : memref<3x2x16x1xf32, #tpu.memory_space<vmem>>, vector<1x1x16x1xf32>
    %12 = vector.shape_cast %11 : vector<1x1x16x1xf32> to vector<16x1xf32>
    %13 = vector.broadcast %12 : vector<16x1xf32> to vector<16x128xf32>
    %14 = arith.mulf %13, %10 : vector<16x128xf32>
    %15 = vector.broadcast %3 : vector<16x1xf32> to vector<16x128xf32>
    %16 = arith.addf %14, %15 : vector<16x128xf32>
    %c0_9 = arith.constant 0 : index
    %c1 = arith.constant 1 : index
    %c0_10 = arith.constant 0 : index
    %c0_11 = arith.constant 0 : index
    %17 = vector.load %arg2[%c0_9, %c1, %c0_10, %c0_11] : memref<3x2x16x1xf32, #tpu.memory_space<vmem>>, vector<1x1x16x1xf32>
    %18 = vector.shape_cast %17 : vector<1x1x16x1xf32> to vector<16x1xf32>
    %19 = vector.broadcast %18 : vector<16x1xf32> to vector<16x128xf32>
    %20 = arith.mulf %19, %0 : vector<16x128xf32>
    %21 = arith.addf %16, %20 : vector<16x128xf32>
    %cst_12 = arith.constant 0.000000e+00 : f32
    %22 = vector.broadcast %cst_12 : f32 to vector<16x128xf32>
    %23 = arith.cmpf oge, %21, %22 : vector<16x128xf32>
    %c0_13 = arith.constant 0 : index
    %c0_14 = arith.constant 0 : index
    %c0_15 = arith.constant 0 : index
    %24 = vector.load %arg4[%c0_13, %c0_14, %c0_15] : memref<3x16x1xf32, #tpu.memory_space<vmem>>, vector<1x16x1xf32>
    %25 = vector.shape_cast %24 : vector<1x16x1xf32> to vector<16x1xf32>
    %26 = vector.broadcast %25 : vector<16x1xf32> to vector<16x128xf32>
    %27 = arith.mulf %26, %21 : vector<16x128xf32>
    %28 = arith.select %23, %21, %27 : vector<16x128xi1>, vector<16x128xf32>
    %c1_16 = arith.constant 1 : index
    %c0_17 = arith.constant 0 : index
    %c0_18 = arith.constant 0 : index
    %29 = vector.load %arg3[%c1_16, %c0_17, %c0_18] : memref<3x16x1xf32, #tpu.memory_space<vmem>>, vector<1x16x1xf32>
    %30 = vector.shape_cast %29 : vector<1x16x1xf32> to vector<16x1xf32>
    %c2_i32 = arith.constant 2 : i32
    %31 = vector.broadcast %c2_i32 : i32 to vector<1x128xi32>
    %32 = arith.cmpi sge, %1, %31 : vector<1x128xi32>
    %c2_i32_19 = arith.constant 2 : i32
    %33 = tpu.dynamic_rotate %28 by %c2_i32_19 dim 1 : vector<16x128xf32>, i32 -> vector<16x128xf32>
    %cst_20 = arith.constant 0.000000e+00 : f32
    %34 = vector.shape_cast %32 : vector<1x128xi1> to vector<1x128xi1>
    %35 = vector.broadcast %34 : vector<1x128xi1> to vector<16x128xi1>
    %36 = vector.broadcast %cst_20 : f32 to vector<16x128xf32>
    %37 = arith.select %35, %33, %36 : vector<16x128xi1>, vector<16x128xf32>
    %c1_21 = arith.constant 1 : index
    %c0_22 = arith.constant 0 : index
    %c0_23 = arith.constant 0 : index
    %c0_24 = arith.constant 0 : index
    %38 = vector.load %arg2[%c1_21, %c0_22, %c0_23, %c0_24] : memref<3x2x16x1xf32, #tpu.memory_space<vmem>>, vector<1x1x16x1xf32>
    %39 = vector.shape_cast %38 : vector<1x1x16x1xf32> to vector<16x1xf32>
    %40 = vector.broadcast %39 : vector<16x1xf32> to vector<16x128xf32>
    %41 = arith.mulf %40, %37 : vector<16x128xf32>
    %42 = vector.broadcast %30 : vector<16x1xf32> to vector<16x128xf32>
    %43 = arith.addf %41, %42 : vector<16x128xf32>
    %c1_25 = arith.constant 1 : index
    %c1_26 = arith.constant 1 : index
    %c0_27 = arith.constant 0 : index
    %c0_28 = arith.constant 0 : index
    %44 = vector.load %arg2[%c1_25, %c1_26, %c0_27, %c0_28] : memref<3x2x16x1xf32, #tpu.memory_space<vmem>>, vector<1x1x16x1xf32>
    %45 = vector.shape_cast %44 : vector<1x1x16x1xf32> to vector<16x1xf32>
    %46 = vector.broadcast %45 : vector<16x1xf32> to vector<16x128xf32>
    %47 = arith.mulf %46, %28 : vector<16x128xf32>
    %48 = arith.addf %43, %47 : vector<16x128xf32>
    %49 = arith.addf %48, %28 : vector<16x128xf32>
    %cst_29 = arith.constant 0.000000e+00 : f32
    %50 = vector.broadcast %cst_29 : f32 to vector<16x128xf32>
    %51 = arith.cmpf oge, %49, %50 : vector<16x128xf32>
    %c1_30 = arith.constant 1 : index
    %c0_31 = arith.constant 0 : index
    %c0_32 = arith.constant 0 : index
    %52 = vector.load %arg4[%c1_30, %c0_31, %c0_32] : memref<3x16x1xf32, #tpu.memory_space<vmem>>, vector<1x16x1xf32>
    %53 = vector.shape_cast %52 : vector<1x16x1xf32> to vector<16x1xf32>
    %54 = vector.broadcast %53 : vector<16x1xf32> to vector<16x128xf32>
    %55 = arith.mulf %54, %49 : vector<16x128xf32>
    %56 = arith.select %51, %49, %55 : vector<16x128xi1>, vector<16x128xf32>
    %c2 = arith.constant 2 : index
    %c0_33 = arith.constant 0 : index
    %c0_34 = arith.constant 0 : index
    %57 = vector.load %arg3[%c2, %c0_33, %c0_34] : memref<3x16x1xf32, #tpu.memory_space<vmem>>, vector<1x16x1xf32>
    %58 = vector.shape_cast %57 : vector<1x16x1xf32> to vector<16x1xf32>
    %c4_i32 = arith.constant 4 : i32
    %59 = vector.broadcast %c4_i32 : i32 to vector<1x128xi32>
    %60 = arith.cmpi sge, %1, %59 : vector<1x128xi32>
    %c4_i32_35 = arith.constant 4 : i32
    %61 = tpu.dynamic_rotate %56 by %c4_i32_35 dim 1 : vector<16x128xf32>, i32 -> vector<16x128xf32>
    %cst_36 = arith.constant 0.000000e+00 : f32
    %62 = vector.shape_cast %60 : vector<1x128xi1> to vector<1x128xi1>
    %63 = vector.broadcast %62 : vector<1x128xi1> to vector<16x128xi1>
    %64 = vector.broadcast %cst_36 : f32 to vector<16x128xf32>
    %65 = arith.select %63, %61, %64 : vector<16x128xi1>, vector<16x128xf32>
    %c2_37 = arith.constant 2 : index
    %c0_38 = arith.constant 0 : index
    %c0_39 = arith.constant 0 : index
    %c0_40 = arith.constant 0 : index
    %66 = vector.load %arg2[%c2_37, %c0_38, %c0_39, %c0_40] : memref<3x2x16x1xf32, #tpu.memory_space<vmem>>, vector<1x1x16x1xf32>
    %67 = vector.shape_cast %66 : vector<1x1x16x1xf32> to vector<16x1xf32>
    %68 = vector.broadcast %67 : vector<16x1xf32> to vector<16x128xf32>
    %69 = arith.mulf %68, %65 : vector<16x128xf32>
    %70 = vector.broadcast %58 : vector<16x1xf32> to vector<16x128xf32>
    %71 = arith.addf %69, %70 : vector<16x128xf32>
    %c2_41 = arith.constant 2 : index
    %c1_42 = arith.constant 1 : index
    %c0_43 = arith.constant 0 : index
    %c0_44 = arith.constant 0 : index
    %72 = vector.load %arg2[%c2_41, %c1_42, %c0_43, %c0_44] : memref<3x2x16x1xf32, #tpu.memory_space<vmem>>, vector<1x1x16x1xf32>
    %73 = vector.shape_cast %72 : vector<1x1x16x1xf32> to vector<16x1xf32>
    %74 = vector.broadcast %73 : vector<16x1xf32> to vector<16x128xf32>
    %75 = arith.mulf %74, %56 : vector<16x128xf32>
    %76 = arith.addf %71, %75 : vector<16x128xf32>
    %77 = arith.addf %76, %56 : vector<16x128xf32>
    %c0_45 = arith.constant 0 : index
    %c0_46 = arith.constant 0 : index
    %78 = vector.load %arg5[%c0_45, %c0_46] : memref<8x8xf32, #tpu.memory_space<vmem>>, vector<8x8xf32>
    %c0_47 = arith.constant 0 : index
    %c0_48 = arith.constant 0 : index
    %79 = vector.load %arg6[%c0_47, %c0_48] : memref<8x1xf32, #tpu.memory_space<vmem>>, vector<8x1xf32>
    %80 = vector.extract_strided_slice %77 {offsets = [0, 0], sizes = [8, 128], strides = [1, 1]} : vector<16x128xf32> to vector<8x128xf32>
    %cst_49 = arith.constant dense<0.000000e+00> : vector<8x128xf32>
    %81 = tpu.matmul %78, %80, %cst_49 {dimension_numbers = #tpu.dot_dimension_numbers<[1], [0], [0], [1], [0, 0, 1, 1], [], []>} : vector<8x8xf32>, vector<8x128xf32>, vector<8x128xf32> -> vector<8x128xf32>
    %82 = vector.broadcast %79 : vector<8x1xf32> to vector<8x128xf32>
    %83 = arith.addf %81, %82 : vector<8x128xf32>
    %c0_50 = arith.constant 0 : index
    %c0_51 = arith.constant 0 : index
    %84 = vector.load %arg7[%c0_50, %c0_51] : memref<16x128xf32, #tpu.memory_space<vmem>>, vector<8x128xf32>
    tpu.vector_store %arg7[%c0_50, %c0_51], %83 {strides = array<i32>} : memref<16x128xf32, #tpu.memory_space<vmem>>, vector<8x128xf32>,
    %85 = vector.extract_strided_slice %77 {offsets = [8, 0], sizes = [8, 128], strides = [1, 1]} : vector<16x128xf32> to vector<8x128xf32>
    %cst_52 = arith.constant dense<0.000000e+00> : vector<8x128xf32>
    %86 = tpu.matmul %78, %85, %cst_52 {dimension_numbers = #tpu.dot_dimension_numbers<[1], [0], [0], [1], [0, 0, 1, 1], [], []>} : vector<8x8xf32>, vector<8x128xf32>, vector<8x128xf32> -> vector<8x128xf32>
    %87 = vector.broadcast %79 : vector<8x1xf32> to vector<8x128xf32>
    %88 = arith.addf %86, %87 : vector<8x128xf32>
    %c8 = arith.constant 8 : index
    %c0_53 = arith.constant 0 : index
    %89 = vector.load %arg7[%c8, %c0_53] : memref<16x128xf32, #tpu.memory_space<vmem>>, vector<8x128xf32>
    tpu.vector_store %arg7[%c8, %c0_53], %88 {strides = array<i32>} : memref<16x128xf32, #tpu.memory_space<vmem>>, vector<8x128xf32>,
    return
  }
  func.func @transform_0(%arg0: i32) -> (i32, i32) {
    %c0_i32 = arith.constant 0 : i32
    %c0_i32_0 = arith.constant 0 : i32
    return %arg0, %c0_i32 : i32, i32
  }
  func.func @transform_1(%arg0: i32) -> (i32, i32, i32, i32) {
    %c0_i32 = arith.constant 0 : i32
    %c0_i32_0 = arith.constant 0 : i32
    %c0_i32_1 = arith.constant 0 : i32
    %c0_i32_2 = arith.constant 0 : i32
    %c0_i32_3 = arith.constant 0 : i32
    return %c0_i32, %c0_i32_0, %c0_i32_1, %c0_i32_2 : i32, i32, i32, i32
  }
  func.func @transform_2(%arg0: i32) -> (i32, i32, i32) {
    %c0_i32 = arith.constant 0 : i32
    %c0_i32_0 = arith.constant 0 : i32
    %c0_i32_1 = arith.constant 0 : i32
    %c0_i32_2 = arith.constant 0 : i32
    return %c0_i32, %c0_i32_0, %c0_i32_1 : i32, i32, i32
  }
  func.func @transform_3(%arg0: i32) -> (i32, i32, i32) {
    %c0_i32 = arith.constant 0 : i32
    %c0_i32_0 = arith.constant 0 : i32
    %c0_i32_1 = arith.constant 0 : i32
    %c0_i32_2 = arith.constant 0 : i32
    return %c0_i32, %c0_i32_0, %c0_i32_1 : i32, i32, i32
  }
  func.func @transform_4(%arg0: i32) -> (i32, i32) {
    %c0_i32 = arith.constant 0 : i32
    %c0_i32_0 = arith.constant 0 : i32
    %c0_i32_1 = arith.constant 0 : i32
    return %c0_i32, %c0_i32_0 : i32, i32
  }
  func.func @transform_5(%arg0: i32) -> (i32, i32) {
    %c0_i32 = arith.constant 0 : i32
    %c0_i32_0 = arith.constant 0 : i32
    %c0_i32_1 = arith.constant 0 : i32
    return %c0_i32, %c0_i32_0 : i32, i32
  }
  func.func @transform_6(%arg0: i32) -> (i32, i32) {
    %c0_i32 = arith.constant 0 : i32
    %c0_i32_0 = arith.constant 0 : i32
    return %arg0, %c0_i32 : i32, i32
  }
}

</mosaic_0001>

<llo_original>
// kernel: tpu_custom_call.1
$region0: #{tpu_custom_call.1}
  #allocation0 [shape = 'u32[]', space=smem, size = 0x4, offset = 0x4, fixed_abs, tag = 'smem constant byte address 0x4 - core index']
  #allocation1 [shape = 'u32[72,128]{1,0:T(1,128)}', space=vmem, size = 0x9000, scoped, tag = 'internal scratch']
  %s0 = inlined_call_operand.vmem [shape: f32[16,128], index: 0, kind: input, shape index: {}]
  %s1 = inlined_call_operand.vmem [shape: f32[3,2,16,1], index: 1, kind: input, shape index: {}]
  %s2 = inlined_call_operand.vmem [shape: f32[3,16,1], index: 2, kind: input, shape index: {}]
  %s3 = inlined_call_operand.vmem [shape: f32[3,16,1], index: 3, kind: input, shape index: {}]
  %s4 = inlined_call_operand.vmem [shape: f32[8,8], index: 4, kind: input, shape index: {}]
  %s5 = inlined_call_operand.vmem [shape: f32[8,1], index: 5, kind: input, shape index: {}]
  %s6 = inlined_call_operand.hbm [shape: f32[16,128], index: 6, kind: output, shape index: {}]
  %s7 = sld [smem:[#allocation0]]
  $region34: #{tpu_custom_call.1} parent=0
    _
  %s9 = ssub.s32 1, %s7
  %s10 = scalar_select 0, %s9, %s7
  $region1: #{tpu_custom_call.1} parent=0
    #allocation2 [shape = 'u8[8192]{0}', space=vmem, size = 0x2000, scoped, tag = 'output window, operand 0, single buffered']
    #allocation3 [shape = 's32[1]{0}', space=sflag, size = 0x4, scoped, tag = 'scoped memory for tpu_custom_call.1']
    %11 = vsyncpa [#allocation3], 0
    // Predicated region
    $region2: #{tpu_custom_call.1} parent=1 // pred_check
      _
    $region3: #{tpu_custom_call.1} parent=1 // pred_check_branch
      %13 = sbr.rel (0) target = $region5
    $region4: #{tpu_custom_call.1} parent=1 // pred_region
      _
    $region5: #{tpu_custom_call.1} parent=1 // pred_fallthru
      _
    // Predicated region
    $region6: #{tpu_custom_call.1} parent=1 // pred_check
      _
    $region7: #{tpu_custom_call.1} parent=1 // pred_check_branch
      %15 = sbr.rel (0) target = $region9
    $region8: #{tpu_custom_call.1} parent=1 // pred_region
      _
    $region9: #{tpu_custom_call.1} parent=1 // pred_fallthru
      _
    // Predicated region
    $region10: #{tpu_custom_call.1} parent=1 // pred_check
      _
    $region11: #{tpu_custom_call.1} parent=1 // pred_check_branch
      %17 = sbr.rel (0) target = $region13
    $region12: #{tpu_custom_call.1} parent=1 // pred_region
      _
    $region13: #{tpu_custom_call.1} parent=1 // pred_fallthru
      _
    // Predicated region
    $region14: #{tpu_custom_call.1} parent=1 // pred_check
      _
    $region15: #{tpu_custom_call.1} parent=1 // pred_check_branch
      %19 = sbr.rel (0) target = $region17
    $region16: #{tpu_custom_call.1} parent=1 // pred_region
      _
    $region17: #{tpu_custom_call.1} parent=1 // pred_fallthru
      _
    // Predicated region
    $region18: #{tpu_custom_call.1} parent=1 // pred_check
      _
    $region19: #{tpu_custom_call.1} parent=1 // pred_check_branch
      %21 = sbr.rel (0) target = $region21
    $region20: #{tpu_custom_call.1} parent=1 // pred_region
      _
    $region21: #{tpu_custom_call.1} parent=1 // pred_fallthru
      _
    // Predicated region
    $region22: #{tpu_custom_call.1} parent=1 // pred_check
      _
    $region23: #{tpu_custom_call.1} parent=1 // pred_check_branch
      %23 = sbr.rel (0) target = $region25
    $region24: #{tpu_custom_call.1} parent=1 // pred_region
      _
    $region25: #{tpu_custom_call.1} parent=1 // pred_fallthru
      _
    %v24 = vld [vmem:[%s0] sm:$0xff]
    %v25 = vld [vmem:[%s0 + $0x8] sm:$0xff]
    %v26 = vlaneseq
    %v27 = vand.u32 %v26, 127
    %v28 = vld [vmem:[%s2] sm:$0xff]
    %v29 = vld [vmem:[%s2 + $0x8] sm:$0xff]
    %vm30 = vcmp.ge.s32.totalorder %v27, 1
    %31 = vrot.lane.b32.xlu0 %v24, 1
    %v32 = vpop.permute.xlu0 %31
    %33 = vrot.lane.b32.xlu0 %v25, 1
    %v34 = vpop.permute.xlu0 %33
    %v35 = vsel %vm30, 1, 0
    %vm36 = vcmp.eq.s32.totalorder %v35, 1
    %v37 = vsel %vm36, %v32, 0.0
    %v38 = vsel %vm36, %v34, 0.0
    %v39 = vld [vmem:[%s1] sm:$0xff]
    %v40 = vld [vmem:[%s1 + $0x8] sm:$0xff]
    %42 = vset.pattern.permute.xlu0 0
    %43 = vperm.xlu0 %42, %v39
    %v44 = vpop.permute.xlu0 %43
    %47 = vset.pattern.permute.xlu0 0
    %48 = vperm.xlu0 %47, %v40
    %v49 = vpop.permute.xlu0 %48
    %v51 = vmul.f32 %v44, %v37
    %v52 = vmul.f32 %v49, %v38
    %54 = vset.pattern.permute.xlu0 0
    %55 = vperm.xlu0 %54, %v28
    %v56 = vpop.permute.xlu0 %55
    %59 = vset.pattern.permute.xlu0 0
    %60 = vperm.xlu0 %59, %v29
    %v61 = vpop.permute.xlu0 %60
    %v63 = vadd.f32 %v51, %v56
    %v64 = vadd.f32 %v52, %v61
    %s65 = scalar_lea.vmem %s1, 16
    %v66 = vld [vmem:[%s65] sm:$0xff]
    %v67 = vld [vmem:[%s65 + $0x8] sm:$0xff]
    %69 = vset.pattern.permute.xlu0 0
    %70 = vperm.xlu0 %69, %v66
    %v71 = vpop.permute.xlu0 %70
    %74 = vset.pattern.permute.xlu0 0
    %75 = vperm.xlu0 %74, %v67
    %v76 = vpop.permute.xlu0 %75
    %v78 = vmul.f32 %v71, %v24
    %v79 = vmul.f32 %v76, %v25
    %v80 = vadd.f32 %v63, %v78
    %v81 = vadd.f32 %v64, %v79
    %vm82 = vcmp.ge.f32.partialorder %v80, 0.0
    %vm83 = vcmp.ge.f32.partialorder %v81, 0.0
    %v84 = vld [vmem:[%s3] sm:$0xff]
    %v85 = vld [vmem:[%s3 + $0x8] sm:$0xff]
    %87 = vset.pattern.permute.xlu0 0
    %88 = vperm.xlu0 %87, %v84
    %v89 = vpop.permute.xlu0 %88
    %92 = vset.pattern.permute.xlu0 0
    %93 = vperm.xlu0 %92, %v85
    %v94 = vpop.permute.xlu0 %93
    %v96 = vmul.f32 %v89, %v80
    %v97 = vmul.f32 %v94, %v81
    %v98 = vsel %vm82, %v80, %v96
    %v99 = vsel %vm83, %v81, %v97
    %s100 = scalar_lea.vmem %s2, 16
    %v101 = vld [vmem:[%s100] sm:$0xff]
    %v102 = vld [vmem:[%s100 + $0x8] sm:$0xff]
    %vm103 = vcmp.ge.s32.totalorder %v27, 2
    %104 = vrot.lane.b32.xlu0 %v98, 2
    %v105 = vpop.permute.xlu0 %104
    %106 = vrot.lane.b32.xlu0 %v99, 2
    %v107 = vpop.permute.xlu0 %106
    %v108 = vsel %vm103, 1, 0
    %vm109 = vcmp.eq.s32.totalorder %v108, 1
    %v110 = vsel %vm109, %v105, 0.0
    %v111 = vsel %vm109, %v107, 0.0
    %s112 = scalar_lea.vmem %s1, 32
    %v113 = vld [vmem:[%s112] sm:$0xff]
    %v114 = vld [vmem:[%s112 + $0x8] sm:$0xff]
    %116 = vset.pattern.permute.xlu0 0
    %117 = vperm.xlu0 %116, %v113
    %v118 = vpop.permute.xlu0 %117
    %121 = vset.pattern.permute.xlu0 0
    %122 = vperm.xlu0 %121, %v114
    %v123 = vpop.permute.xlu0 %122
    %v125 = vmul.f32 %v118, %v110
    %v126 = vmul.f32 %v123, %v111
    %128 = vset.pattern.permute.xlu0 0
    %129 = vperm.xlu0 %128, %v101
    %v130 = vpop.permute.xlu0 %129
    %133 = vset.pattern.permute.xlu0 0
    %134 = vperm.xlu0 %133, %v102
    %v135 = vpop.permute.xlu0 %134
    %v137 = vadd.f32 %v125, %v130
    %v138 = vadd.f32 %v126, %v135
    %s139 = scalar_lea.vmem %s1, 48
    %v140 = vld [vmem:[%s139] sm:$0xff]
    %v141 = vld [vmem:[%s139 + $0x8] sm:$0xff]
    %143 = vset.pattern.permute.xlu0 0
    %144 = vperm.xlu0 %143, %v140
    %v145 = vpop.permute.xlu0 %144
    %148 = vset.pattern.permute.xlu0 0
    %149 = vperm.xlu0 %148, %v141
    %v150 = vpop.permute.xlu0 %149
    %v152 = vmul.f32 %v145, %v98
    %v153 = vmul.f32 %v150, %v99
    %v154 = vadd.f32 %v137, %v152
    %v155 = vadd.f32 %v138, %v153
    %v156 = vadd.f32 %v154, %v98
    %v157 = vadd.f32 %v155, %v99
    %vm158 = vcmp.ge.f32.partialorder %v156, 0.0
    %vm159 = vcmp.ge.f32.partialorder %v157, 0.0
    %s160 = scalar_lea.vmem %s3, 16
    %v161 = vld [vmem:[%s160] sm:$0xff]
    %v162 = vld [vmem:[%s160 + $0x8] sm:$0xff]
    %164 = vset.pattern.permute.xlu0 0
    %165 = vperm.xlu0 %164, %v161
    %v166 = vpop.permute.xlu0 %165
    %169 = vset.pattern.permute.xlu0 0
    %170 = vperm.xlu0 %169, %v162
    %v171 = vpop.permute.xlu0 %170
    %v173 = vmul.f32 %v166, %v156
    %v174 = vmul.f32 %v171, %v157
    %v175 = vsel %vm158, %v156, %v173
    %v176 = vsel %vm159, %v157, %v174
    %s177 = scalar_lea.vmem %s2, 32
    %v178 = vld [vmem:[%s177] sm:$0xff]
    %v179 = vld [vmem:[%s177 + $0x8] sm:$0xff]
    %vm180 = vcmp.ge.s32.totalorder %v27, 4
    %181 = vrot.lane.b32.xlu0 %v175, 4
    %v182 = vpop.permute.xlu0 %181
    %183 = vrot.lane.b32.xlu0 %v176, 4
    %v184 = vpop.permute.xlu0 %183
    %v185 = vsel %vm180, 1, 0
    %vm186 = vcmp.eq.s32.totalorder %v185, 1
    %v187 = vsel %vm186, %v182, 0.0
    %v188 = vsel %vm186, %v184, 0.0
    %s189 = scalar_lea.vmem %s1, 64
    %v190 = vld [vmem:[%s189] sm:$0xff]
    %v191 = vld [vmem:[%s189 + $0x8] sm:$0xff]
    %193 = vset.pattern.permute.xlu0 0
    %194 = vperm.xlu0 %193, %v190
    %v195 = vpop.permute.xlu0 %194
    %198 = vset.pattern.permute.xlu0 0
    %199 = vperm.xlu0 %198, %v191
    %v200 = vpop.permute.xlu0 %199
    %v202 = vmul.f32 %v195, %v187
    %v203 = vmul.f32 %v200, %v188
    %205 = vset.pattern.permute.xlu0 0
    %206 = vperm.xlu0 %205, %v178
    %v207 = vpop.permute.xlu0 %206
    %210 = vset.pattern.permute.xlu0 0
    %211 = vperm.xlu0 %210, %v179
    %v212 = vpop.permute.xlu0 %211
    %v214 = vadd.f32 %v202, %v207
    %v215 = vadd.f32 %v203, %v212
    %s216 = scalar_lea.vmem %s1, 80
    %v217 = vld [vmem:[%s216] sm:$0xff]
    %v218 = vld [vmem:[%s216 + $0x8] sm:$0xff]
    %220 = vset.pattern.permute.xlu0 0
    %221 = vperm.xlu0 %220, %v217
    %v222 = vpop.permute.xlu0 %221
    %225 = vset.pattern.permute.xlu0 0
    %226 = vperm.xlu0 %225, %v218
    %v227 = vpop.permute.xlu0 %226
    %v229 = vmul.f32 %v222, %v175
    %v230 = vmul.f32 %v227, %v176
    %v231 = vadd.f32 %v214, %v229
    %v232 = vadd.f32 %v215, %v230
    %v233 = vadd.f32 %v231, %v175
    %v234 = vadd.f32 %v232, %v176
    %v235 = vld [vmem:[%s4] sm:$0xff]
    %v236 = vld [vmem:[%s5] sm:$0xff]
    %238 = vset.pattern.permute.xlu0 0
    %239 = vperm.xlu0 %238, %v236
    %v240 = vpop.permute.xlu0 %239
    %vm242 = vcmask 64512
    %v244 = vsel %vm242, %v235, 0
    %246 = vmatpush.msra.mxu0 0.0
    %247 = vmatpush.msra.mxu0 0.0
    %248 = vmatpush.msra.mxu0 0.0
    %249 = vmatpush.msra.mxu0 0.0
    %250 = vmatpush.msra.mxu0 0.0
    %251 = vmatpush.msra.mxu0 0.0
    %252 = vmatpush.msra.mxu0 0.0
    %253 = vmatpush.msra.mxu0 0.0
    %254 = vmatpush.msra.mxu0 0.0
    %255 = vmatpush.msra.mxu0 0.0
    %256 = vmatpush.msra.mxu0 0.0
    %257 = vmatpush.msra.mxu0 0.0
    %258 = vmatpush.msra.mxu0 0.0
    %259 = vmatpush.msra.mxu0 0.0
    %260 = vmatpush.msra.mxu0 0.0
    %261 = vmatpush.msra.mxu0 %v233
    %262 = vmatmul.f32.gmra.mxu0 %v244
    %v263 = vpop.f32.mrf.mxu0
    %v264 = vadd.f32 %v240, %v263
    %265 = vdwg.mxu0
    %266 = vst [vmem:[#allocation2] sm:$0xff] %v264
    %267 = vmatpush.msra.mxu0 0.0
    %268 = vmatpush.msra.mxu0 0.0
    %269 = vmatpush.msra.mxu0 0.0
    %270 = vmatpush.msra.mxu0 0.0
    %271 = vmatpush.msra.mxu0 0.0
    %272 = vmatpush.msra.mxu0 0.0
    %273 = vmatpush.msra.mxu0 0.0
    %274 = vmatpush.msra.mxu0 0.0
    %275 = vmatpush.msra.mxu0 0.0
    %276 = vmatpush.msra.mxu0 0.0
    %277 = vmatpush.msra.mxu0 0.0
    %278 = vmatpush.msra.mxu0 0.0
    %279 = vmatpush.msra.mxu0 0.0
    %280 = vmatpush.msra.mxu0 0.0
    %281 = vmatpush.msra.mxu0 0.0
    %282 = vmatpush.msra.mxu0 %v234
    %283 = vmatmul.f32.gmra.mxu0 %v244
    %v284 = vpop.f32.mrf.mxu0
    %v285 = vadd.f32 %v240, %v284
    %286 = vdwg.mxu0
    %287 = vst [vmem:[#allocation2 + $0x8] sm:$0xff] %v285
    // Predicated region
    $region26: #{tpu_custom_call.1} parent=1 // pred_check
      _
    $region27: #{tpu_custom_call.1} parent=1 // pred_check_branch
      %289 = sbr.rel (0) target = $region29
    $region28: #{tpu_custom_call.1} parent=1 // pred_region
      %291 = vsyncadd [#allocation3], 0
      %s292 = sshll.u32 [#allocation2], 4
      %s293 = int_to_ptr.vmem [resolvable:$true] %s292
      %s294 = sshll.u32 %s6, 4
      %s295 = int_to_ptr.hbm [resolvable:$true] %s294
      %300 = dma.vmem_to_hbm [thread:$0]  %s293, 256, %s295, [#allocation3], 128, 128, 8
    $region29: #{tpu_custom_call.1} parent=1 // pred_fallthru
      _
    // Predicated region
    $region30: #{tpu_custom_call.1} parent=1 // pred_check
      _
    $region31: #{tpu_custom_call.1} parent=1 // pred_check_branch
      %302 = sbr.rel (0) target = $region33
    $region32: #{tpu_custom_call.1} parent=1 // pred_region
      %304 = dma.done [#allocation3], 256
    $region33: #{tpu_custom_call.1} parent=1 // pred_fallthru
      _
    %305 = vsyncpa [#allocation3], 1

</llo_original>
